<compile_context>
chip_gen: v5e
topology: v5e:2x2
jax: 0.10.0
libtpu: 0.0.40
codegen_flags: <defaults>
</compile_context>

<pallas_src>
import functools

import jax
import jax.numpy as jnp
from jax.experimental import pallas as pl
from jax.experimental.pallas import tpu as pltpu

# ----- model hyper-parameters (synthetic, small) -----
input_size = 16          # global in the original script
N_BLOCKS = 2
UNITS_PER_BLOCK = 2      # ResiBlock(n_resUnits=2, ...)
HIDDEN = 32
OUTPUT_NODES = 16
FINAL_OUT = 30
BN_EPS = 1e-5
BATCH = 8

PAD = 128                                     # lane-dense width for every feature dim
N_MATS = 1 + N_BLOCKS * UNITS_PER_BLOCK + 2   # 7 weight matrices total
N_BIAS_ROWS = 8                               # bias slab padded to a full (8,128) tile


def _lift_model2_kernel(x_ref, w_ref, b_ref, out_ref):
    """x_ref: [TB,128]  w_ref: [7,128,128]  b_ref: [8,128]  out_ref: [TB,256]."""
    # input layer
    h = jnp.dot(x_ref[...], w_ref[0],
                preferred_element_type=jnp.float32) + b_ref[0:1, :]

    # residual blocks (BN already folded into W/b; Dropout is identity in eval mode)
    u = 1
    for _blk in range(N_BLOCKS):
        identity = h
        for _unit in range(UNITS_PER_BLOCK):
            y = jnp.dot(h, w_ref[u],
                        preferred_element_type=jnp.float32) + b_ref[u:u + 1, :]
            h = jnp.maximum(y, 0.0)
            u += 1
        h = identity + h

    # inter layer and output layer
    inter = jnp.dot(h, w_ref[u],
                    preferred_element_type=jnp.float32) + b_ref[u:u + 1, :]
    out = jnp.dot(inter, w_ref[u + 1],
                  preferred_element_type=jnp.float32) + b_ref[u + 1:u + 2, :]

    # single lane-dense [TB, 256] store: [ inter(padded) | out(padded) ]
    out_ref[...] = jnp.concatenate([inter, out], axis=1).astype(out_ref.dtype)


@functools.partial(jax.jit, static_argnames=("block_b",))
def lift_model2_forward(x, w_slab, b_slab, *, block_b=8):
    """x: [B, input_size] float32. w_slab: [7,128,128], b_slab: [8,128] (pre-packed)."""
    B = x.shape[0]
    assert B % block_b == 0, "batch must be a multiple of the batch tile"

    # zero-pad features to 128 lanes (cheap XLA op outside the kernel)
    x_pad = jnp.zeros((B, PAD), jnp.float32).at[:, :input_size].set(x)

    packed = pl.pallas_call(
        _lift_model2_kernel,
        out_shape=jax.ShapeDtypeStruct((B, 2 * PAD), jnp.float32),
        grid=(B // block_b,),
        in_specs=[
            pl.BlockSpec((block_b, PAD), lambda i: (i, 0)),          # activations
            pl.BlockSpec((N_MATS, PAD, PAD), lambda i: (0, 0, 0)),   # all weights, resident
            pl.BlockSpec((N_BIAS_ROWS, PAD), lambda i: (0, 0)),      # all biases, resident
        ],
        out_specs=pl.BlockSpec((block_b, 2 * PAD), lambda i: (i, 0)),
        compiler_params=pltpu.CompilerParams(
            dimension_semantics=("parallel",)),
    )(x_pad, w_slab, b_slab)

    inter = packed[:, :OUTPUT_NODES]
    out = packed[:, PAD:PAD + FINAL_OUT]
    return inter, out


def init_params(key):
    """PyTorch-style params (weights pre-transposed to [in, out]); BN kept un-folded here."""
    n_units = N_BLOCKS * UNITS_PER_BLOCK
    keys = jax.random.split(key, 8)

    def linear(k, fan_in, fan_out):
        kw, kb = jax.random.split(k)
        bound = 1.0 / jnp.sqrt(fan_in)
        # PyTorch weight is [out, in]; return transposed [in, out].
        w = jax.random.uniform(kw, (fan_out, fan_in), jnp.float32, -bound, bound).T
        b = jax.random.uniform(kb, (1, fan_out), jnp.float32, -bound, bound)
        return w, b

    w_in, b_in = linear(keys[0], input_size, HIDDEN)

    unit_keys = jax.random.split(keys[1], n_units)
    wu, bu = [], []
    for uk in unit_keys:
        w, b = linear(uk, HIDDEN, HIDDEN)
        wu.append(w)
        bu.append(b)
    wu = jnp.stack(wu)                      # [n_units, H, H]
    bu = jnp.stack(bu)                      # [n_units, 1, H]

    # non-trivial BatchNorm running stats / affine params (exercise the BN fold)
    gamma = jax.random.uniform(keys[4], (n_units, 1, HIDDEN), jnp.float32, 0.8, 1.2)
    beta = 0.1 * jax.random.normal(keys[5], (n_units, 1, HIDDEN), jnp.float32)
    mean = 0.1 * jax.random.normal(keys[6], (n_units, 1, HIDDEN), jnp.float32)
    var = jax.random.uniform(keys[7], (n_units, 1, HIDDEN), jnp.float32, 0.5, 1.5)

    w_int, b_int = linear(keys[2], HIDDEN, OUTPUT_NODES)
    w_out, b_out = linear(keys[3], OUTPUT_NODES, FINAL_OUT)

    return dict(w_in=w_in, b_in=b_in, wu=wu, bu=bu, gamma=gamma, beta=beta,
                mean=mean, var=var, w_int=w_int, b_int=b_int,
                w_out=w_out, b_out=b_out)


def pack_params(p):
    """Fold eval-mode BN into the unit Linears, zero-pad every feature dim to 128 lanes,
    and pack everything into two contiguous slabs: weights [7,128,128], biases [8,128]."""
    def pad_w(w):  # [in, out] -> [128, 128]
        return jnp.zeros((PAD, PAD), jnp.float32).at[:w.shape[0], :w.shape[1]].set(w)

    def pad_b(b):  # [1, out] -> [128]
        return jnp.zeros((PAD,), jnp.float32).at[:b.shape[1]].set(b[0])

    ws = [pad_w(p["w_in"])]
    bs = [pad_b(p["b_in"])]
    n_units = N_BLOCKS * UNITS_PER_BLOCK
    for u in range(n_units):
        s = p["gamma"][u] / jnp.sqrt(p["var"][u] + BN_EPS)      # [1, H]
        w_f = p["wu"][u] * s                                     # column-wise scale
        b_f = (p["bu"][u] - p["mean"][u]) * s + p["beta"][u]
        ws.append(pad_w(w_f))
        bs.append(pad_b(b_f))
    ws += [pad_w(p["w_int"]), pad_w(p["w_out"])]
    bs += [pad_b(p["b_int"]), pad_b(p["b_out"])]

    w_slab = jnp.stack(ws)                                       # [7, 128, 128]
    b_slab = jnp.zeros((N_BIAS_ROWS, PAD), jnp.float32).at[:len(bs)].set(jnp.stack(bs))
    return w_slab, b_slab


def reference_forward(x, p):
    """Pure-JAX reference (eval-mode semantics, un-folded BN) for correctness."""
    h = x @ p["w_in"] + p["b_in"]
    u = 0
    for _ in range(N_BLOCKS):
        identity = h
        for _ in range(UNITS_PER_BLOCK):
            y = h @ p["wu"][u] + p["bu"][u]
            y = (y - p["mean"][u]) / jnp.sqrt(p["var"][u] + BN_EPS)
            y = y * p["gamma"][u] + p["beta"][u]
            h = jnp.maximum(y, 0.0)
            u += 1
        h = identity + h
    inter = h @ p["w_int"] + p["b_int"]
    out = inter @ p["w_out"] + p["b_out"]
    return inter, out


if __name__ == "__main__":
    key = jax.random.PRNGKey(0)
    k_x, k_p = jax.random.split(key)
    x = jax.random.normal(k_x, (BATCH, input_size), jnp.float32)
    params = init_params(k_p)
    w_slab, b_slab = pack_params(params)

    inter, out = lift_model2_forward(x, w_slab, b_slab, block_b=BATCH)
    jax.block_until_ready((inter, out))

    inter_ref, out_ref = reference_forward(x, params)
    assert inter.shape == (BATCH, OUTPUT_NODES) and out.shape == (BATCH, FINAL_OUT)
    # BN-fold reassociates the math slightly; keep a tight but safe tolerance.
    assert jnp.allclose(inter, inter_ref, atol=1e-4, rtol=1e-4)
    assert jnp.allclose(out, out_ref, atol=1e-4, rtol=1e-4)

    print("KERNEL_OK")
</pallas_src>

<mosaic_0001>
module attributes {stable_mosaic.version = 11 : i64} {
  func.func @_lift_model2_kernel(%arg0: i32, %arg1: memref<8x128xf32, #tpu.memory_space<vmem>>, %arg2: memref<7x128x128xf32, #tpu.memory_space<vmem>>, %arg3: memref<8x128xf32, #tpu.memory_space<vmem>>, %arg4: memref<8x256xf32, #tpu.memory_space<vmem>>) attributes {dimension_semantics = [#tpu.dimension_semantics<parallel>], iteration_bounds = array<i64: 1>, scalar_prefetch = 0 : i64, scratch_operands = 0 : i64, tpu.core_type = #tpu.core_type<tc>, window_params = [{transform_indices = @transform_0, window_bounds = array<i64: 8, 128>}, {pipeline_mode = #tpu.pipeline_mode<synchronous>, transform_indices = @transform_1, window_bounds = array<i64: 7, 128, 128>}, {pipeline_mode = #tpu.pipeline_mode<synchronous>, transform_indices = @transform_2, window_bounds = array<i64: 8, 128>}, {transform_indices = @transform_3, window_bounds = array<i64: 8, 256>}]} {
    %c0 = arith.constant 0 : index
    %c0_0 = arith.constant 0 : index
    %0 = vector.load %arg1[%c0, %c0_0] : memref<8x128xf32, #tpu.memory_space<vmem>>, vector<8x128xf32>
    %c0_1 = arith.constant 0 : index
    %c0_2 = arith.constant 0 : index
    %c0_3 = arith.constant 0 : index
    %1 = vector.load %arg2[%c0_1, %c0_2, %c0_3] : memref<7x128x128xf32, #tpu.memory_space<vmem>>, vector<1x128x128xf32>
    %2 = vector.shape_cast %1 : vector<1x128x128xf32> to vector<128x128xf32>
    %cst = arith.constant dense<0.000000e+00> : vector<8x128xf32>
    %3 = tpu.matmul %0, %2, %cst {dimension_numbers = #tpu.dot_dimension_numbers<[1], [0], [0], [1], [0, 0, 1, 1], [], []>} : vector<8x128xf32>, vector<128x128xf32>, vector<8x128xf32> -> vector<8x128xf32>
    %c0_4 = arith.constant 0 : index
    %c0_5 = arith.constant 0 : index
    %4 = vector.load %arg3[%c0_4, %c0_5] : memref<8x128xf32, #tpu.memory_space<vmem>>, vector<1x128xf32>
    %5 = vector.broadcast %4 : vector<1x128xf32> to vector<8x128xf32>
    %6 = arith.addf %3, %5 : vector<8x128xf32>
    %c1 = arith.constant 1 : index
    %c0_6 = arith.constant 0 : index
    %c0_7 = arith.constant 0 : index
    %7 = vector.load %arg2[%c1, %c0_6, %c0_7] : memref<7x128x128xf32, #tpu.memory_space<vmem>>, vector<1x128x128xf32>
    %8 = vector.shape_cast %7 : vector<1x128x128xf32> to vector<128x128xf32>
    %cst_8 = arith.constant dense<0.000000e+00> : vector<8x128xf32>
    %9 = tpu.matmul %6, %8, %cst_8 {dimension_numbers = #tpu.dot_dimension_numbers<[1], [0], [0], [1], [0, 0, 1, 1], [], []>} : vector<8x128xf32>, vector<128x128xf32>, vector<8x128xf32> -> vector<8x128xf32>
    %c1_9 = arith.constant 1 : index
    %c0_10 = arith.constant 0 : index
    %10 = vector.load %arg3[%c1_9, %c0_10] : memref<8x128xf32, #tpu.memory_space<vmem>>, vector<1x128xf32>
    %11 = vector.broadcast %10 : vector<1x128xf32> to vector<8x128xf32>
    %12 = arith.addf %9, %11 : vector<8x128xf32>
    %cst_11 = arith.constant 0.000000e+00 : f32
    %13 = vector.broadcast %cst_11 : f32 to vector<8x128xf32>
    %14 = arith.maximumf %12, %13 : vector<8x128xf32>
    %c2 = arith.constant 2 : index
    %c0_12 = arith.constant 0 : index
    %c0_13 = arith.constant 0 : index
    %15 = vector.load %arg2[%c2, %c0_12, %c0_13] : memref<7x128x128xf32, #tpu.memory_space<vmem>>, vector<1x128x128xf32>
    %16 = vector.shape_cast %15 : vector<1x128x128xf32> to vector<128x128xf32>
    %cst_14 = arith.constant dense<0.000000e+00> : vector<8x128xf32>
    %17 = tpu.matmul %14, %16, %cst_14 {dimension_numbers = #tpu.dot_dimension_numbers<[1], [0], [0], [1], [0, 0, 1, 1], [], []>} : vector<8x128xf32>, vector<128x128xf32>, vector<8x128xf32> -> vector<8x128xf32>
    %c2_15 = arith.constant 2 : index
    %c0_16 = arith.constant 0 : index
    %18 = vector.load %arg3[%c2_15, %c0_16] : memref<8x128xf32, #tpu.memory_space<vmem>>, vector<1x128xf32>
    %19 = vector.broadcast %18 : vector<1x128xf32> to vector<8x128xf32>
    %20 = arith.addf %17, %19 : vector<8x128xf32>
    %cst_17 = arith.constant 0.000000e+00 : f32
    %21 = vector.broadcast %cst_17 : f32 to vector<8x128xf32>
    %22 = arith.maximumf %20, %21 : vector<8x128xf32>
    %23 = arith.addf %6, %22 : vector<8x128xf32>
    %c3 = arith.constant 3 : index
    %c0_18 = arith.constant 0 : index
    %c0_19 = arith.constant 0 : index
    %24 = vector.load %arg2[%c3, %c0_18, %c0_19] : memref<7x128x128xf32, #tpu.memory_space<vmem>>, vector<1x128x128xf32>
    %25 = vector.shape_cast %24 : vector<1x128x128xf32> to vector<128x128xf32>
    %cst_20 = arith.constant dense<0.000000e+00> : vector<8x128xf32>
    %26 = tpu.matmul %23, %25, %cst_20 {dimension_numbers = #tpu.dot_dimension_numbers<[1], [0], [0], [1], [0, 0, 1, 1], [], []>} : vector<8x128xf32>, vector<128x128xf32>, vector<8x128xf32> -> vector<8x128xf32>
    %c3_21 = arith.constant 3 : index
    %c0_22 = arith.constant 0 : index
    %27 = vector.load %arg3[%c3_21, %c0_22] : memref<8x128xf32, #tpu.memory_space<vmem>>, vector<1x128xf32>
    %28 = vector.broadcast %27 : vector<1x128xf32> to vector<8x128xf32>
    %29 = arith.addf %26, %28 : vector<8x128xf32>
    %cst_23 = arith.constant 0.000000e+00 : f32
    %30 = vector.broadcast %cst_23 : f32 to vector<8x128xf32>
    %31 = arith.maximumf %29, %30 : vector<8x128xf32>
    %c4 = arith.constant 4 : index
    %c0_24 = arith.constant 0 : index
    %c0_25 = arith.constant 0 : index
    %32 = vector.load %arg2[%c4, %c0_24, %c0_25] : memref<7x128x128xf32, #tpu.memory_space<vmem>>, vector<1x128x128xf32>
    %33 = vector.shape_cast %32 : vector<1x128x128xf32> to vector<128x128xf32>
    %cst_26 = arith.constant dense<0.000000e+00> : vector<8x128xf32>
    %34 = tpu.matmul %31, %33, %cst_26 {dimension_numbers = #tpu.dot_dimension_numbers<[1], [0], [0], [1], [0, 0, 1, 1], [], []>} : vector<8x128xf32>, vector<128x128xf32>, vector<8x128xf32> -> vector<8x128xf32>
    %c4_27 = arith.constant 4 : index
    %c0_28 = arith.constant 0 : index
    %35 = vector.load %arg3[%c4_27, %c0_28] : memref<8x128xf32, #tpu.memory_space<vmem>>, vector<1x128xf32>
    %36 = vector.broadcast %35 : vector<1x128xf32> to vector<8x128xf32>
    %37 = arith.addf %34, %36 : vector<8x128xf32>
    %cst_29 = arith.constant 0.000000e+00 : f32
    %38 = vector.broadcast %cst_29 : f32 to vector<8x128xf32>
    %39 = arith.maximumf %37, %38 : vector<8x128xf32>
    %40 = arith.addf %23, %39 : vector<8x128xf32>
    %c5 = arith.constant 5 : index
    %c0_30 = arith.constant 0 : index
    %c0_31 = arith.constant 0 : index
    %41 = vector.load %arg2[%c5, %c0_30, %c0_31] : memref<7x128x128xf32, #tpu.memory_space<vmem>>, vector<1x128x128xf32>
    %42 = vector.shape_cast %41 : vector<1x128x128xf32> to vector<128x128xf32>
    %cst_32 = arith.constant dense<0.000000e+00> : vector<8x128xf32>
    %43 = tpu.matmul %40, %42, %cst_32 {dimension_numbers = #tpu.dot_dimension_numbers<[1], [0], [0], [1], [0, 0, 1, 1], [], []>} : vector<8x128xf32>, vector<128x128xf32>, vector<8x128xf32> -> vector<8x128xf32>
    %c5_33 = arith.constant 5 : index
    %c0_34 = arith.constant 0 : index
    %44 = vector.load %arg3[%c5_33, %c0_34] : memref<8x128xf32, #tpu.memory_space<vmem>>, vector<1x128xf32>
    %45 = vector.broadcast %44 : vector<1x128xf32> to vector<8x128xf32>
    %46 = arith.addf %43, %45 : vector<8x128xf32>
    %c6 = arith.constant 6 : index
    %c0_35 = arith.constant 0 : index
    %c0_36 = arith.constant 0 : index
    %47 = vector.load %arg2[%c6, %c0_35, %c0_36] : memref<7x128x128xf32, #tpu.memory_space<vmem>>, vector<1x128x128xf32>
    %48 = vector.shape_cast %47 : vector<1x128x128xf32> to vector<128x128xf32>
    %cst_37 = arith.constant dense<0.000000e+00> : vector<8x128xf32>
    %49 = tpu.matmul %46, %48, %cst_37 {dimension_numbers = #tpu.dot_dimension_numbers<[1], [0], [0], [1], [0, 0, 1, 1], [], []>} : vector<8x128xf32>, vector<128x128xf32>, vector<8x128xf32> -> vector<8x128xf32>
    %c6_38 = arith.constant 6 : index
    %c0_39 = arith.constant 0 : index
    %50 = vector.load %arg3[%c6_38, %c0_39] : memref<8x128xf32, #tpu.memory_space<vmem>>, vector<1x128xf32>
    %51 = vector.broadcast %50 : vector<1x128xf32> to vector<8x128xf32>
    %52 = arith.addf %49, %51 : vector<8x128xf32>
    %53 = tpu.concatenate %46, %52 in 1 : vector<8x128xf32>, vector<8x128xf32> -> vector<8x256xf32>
    %c0_40 = arith.constant 0 : index
    %c0_41 = arith.constant 0 : index
    %54 = vector.load %arg4[%c0_40, %c0_41] : memref<8x256xf32, #tpu.memory_space<vmem>>, vector<8x256xf32>
    tpu.vector_store %arg4[%c0_40, %c0_41], %53 {strides = array<i32>} : memref<8x256xf32, #tpu.memory_space<vmem>>, vector<8x256xf32>,
    return
  }
  func.func @transform_0(%arg0: i32) -> (i32, i32) {
    %c0_i32 = arith.constant 0 : i32
    %c0_i32_0 = arith.constant 0 : i32
    return %arg0, %c0_i32 : i32, i32
  }
  func.func @transform_1(%arg0: i32) -> (i32, i32, i32) {
    %c0_i32 = arith.constant 0 : i32
    %c0_i32_0 = arith.constant 0 : i32
    %c0_i32_1 = arith.constant 0 : i32
    %c0_i32_2 = arith.constant 0 : i32
    return %c0_i32, %c0_i32_0, %c0_i32_1 : i32, i32, i32
  }
  func.func @transform_2(%arg0: i32) -> (i32, i32) {
    %c0_i32 = arith.constant 0 : i32
    %c0_i32_0 = arith.constant 0 : i32
    %c0_i32_1 = arith.constant 0 : i32
    return %c0_i32, %c0_i32_0 : i32, i32
  }
  func.func @transform_3(%arg0: i32) -> (i32, i32) {
    %c0_i32 = arith.constant 0 : i32
    %c0_i32_0 = arith.constant 0 : i32
    return %arg0, %c0_i32 : i32, i32
  }
}

</mosaic_0001>

<llo_original>
// kernel: lift_model2_forward.1
$region0: #{lift_model2_forward.1}
  #allocation0 [shape = 'u32[]', space=smem, size = 0x4, offset = 0x4, fixed_abs, tag = 'smem constant byte address 0x4 - core index']
  #allocation1 [shape = 'u32[72,128]{1,0:T(1,128)}', space=vmem, size = 0x9000, scoped, tag = 'internal scratch']
  %s0 = inlined_call_operand.vmem [shape: f32[8,128], index: 0, kind: input, shape index: {}]
  %s1 = inlined_call_operand.hbm [shape: f32[7,128,128], index: 1, kind: input, shape index: {}]
  %s2 = inlined_call_operand.vmem [shape: f32[8,128], index: 2, kind: input, shape index: {}]
  %s3 = inlined_call_operand.vmem [shape: f32[8,256], index: 3, kind: output, shape index: {}]
  %s4 = sld [smem:[#allocation0]]
  $region26: #{lift_model2_forward.1} parent=0
    _
  %s6 = ssub.s32 1, %s4
  %s7 = scalar_select 0, %s6, %s4
  $region1: #{lift_model2_forward.1} parent=0
    #allocation2 [shape = 'u8[458752]{0}', space=vmem, size = 0x70000, scoped, tag = 'input window, operand 1, single buffered']
    #allocation3 [shape = 's32[1]{0}', space=sflag, size = 0x4, scoped, tag = 'scoped memory for lift_model2_forward.1']
    %8 = vsyncpa [#allocation3], 0
    // Predicated region
    $region2: #{lift_model2_forward.1} parent=1 // pred_check
      _
    $region3: #{lift_model2_forward.1} parent=1 // pred_check_branch
      %10 = sbr.rel (0) target = $region5
    $region4: #{lift_model2_forward.1} parent=1 // pred_region
      _
    $region5: #{lift_model2_forward.1} parent=1 // pred_fallthru
      _
    // Predicated region
    $region6: #{lift_model2_forward.1} parent=1 // pred_check
      _
    $region7: #{lift_model2_forward.1} parent=1 // pred_check_branch
      %12 = sbr.rel (0) target = $region9
    $region8: #{lift_model2_forward.1} parent=1 // pred_region
      %14 = vsyncadd [#allocation3], 0
      %s15 = sshll.u32 %s1, 4
      %s16 = int_to_ptr.hbm [resolvable:$true] %s15
      %s17 = sshll.u32 [#allocation2], 4
      %s18 = int_to_ptr.vmem [resolvable:$true] %s17
      %23 = dma.hbm_to_vmem [thread:$0]  %s16, 14336, %s18, [#allocation3], 128, 128, 8
    $region9: #{lift_model2_forward.1} parent=1 // pred_fallthru
      _
    // Predicated region
    $region10: #{lift_model2_forward.1} parent=1 // pred_check
      _
    $region11: #{lift_model2_forward.1} parent=1 // pred_check_branch
      %25 = sbr.rel (0) target = $region13
    $region12: #{lift_model2_forward.1} parent=1 // pred_region
      _
    $region13: #{lift_model2_forward.1} parent=1 // pred_fallthru
      _
    // Predicated region
    $region14: #{lift_model2_forward.1} parent=1 // pred_check
      _
    $region15: #{lift_model2_forward.1} parent=1 // pred_check_branch
      %27 = sbr.rel (0) target = $region17
    $region16: #{lift_model2_forward.1} parent=1 // pred_region
      %29 = dma.done [#allocation3], 14336
    $region17: #{lift_model2_forward.1} parent=1 // pred_fallthru
      _
    %v30 = vld [vmem:[%s0] sm:$0xff]
    %v31 = vld [vmem:[#allocation2] sm:$0xff]
    %v32 = vld [vmem:[#allocation2 + $0x8] sm:$0xff]
    %v33 = vld [vmem:[#allocation2 + $0x10] sm:$0xff]
    %v34 = vld [vmem:[#allocation2 + $0x18] sm:$0xff]
    %v35 = vld [vmem:[#allocation2 + $0x20] sm:$0xff]
    %v36 = vld [vmem:[#allocation2 + $0x28] sm:$0xff]
    %v37 = vld [vmem:[#allocation2 + $0x30] sm:$0xff]
    %v38 = vld [vmem:[#allocation2 + $0x38] sm:$0xff]
    %v39 = vld [vmem:[#allocation2 + $0x40] sm:$0xff]
    %v40 = vld [vmem:[#allocation2 + $0x48] sm:$0xff]
    %v41 = vld [vmem:[#allocation2 + $0x50] sm:$0xff]
    %v42 = vld [vmem:[#allocation2 + $0x58] sm:$0xff]
    %v43 = vld [vmem:[#allocation2 + $0x60] sm:$0xff]
    %v44 = vld [vmem:[#allocation2 + $0x68] sm:$0xff]
    %v45 = vld [vmem:[#allocation2 + $0x70] sm:$0xff]
    %v46 = vld [vmem:[#allocation2 + $0x78] sm:$0xff]
    %v47 = vld [vmem:[%s2] sm:$0x1]
    %v48 = vperm.slane %v47, 0
    %49 = vmatpush.msra.mxu0 %v46
    %50 = vmatpush.msra.mxu0 %v45
    %51 = vmatpush.msra.mxu0 %v44
    %52 = vmatpush.msra.mxu0 %v43
    %53 = vmatpush.msra.mxu0 %v42
    %54 = vmatpush.msra.mxu0 %v41
    %55 = vmatpush.msra.mxu0 %v40
    %56 = vmatpush.msra.mxu0 %v39
    %57 = vmatpush.msra.mxu0 %v38
    %58 = vmatpush.msra.mxu0 %v37
    %59 = vmatpush.msra.mxu0 %v36
    %60 = vmatpush.msra.mxu0 %v35
    %61 = vmatpush.msra.mxu0 %v34
    %62 = vmatpush.msra.mxu0 %v33
    %63 = vmatpush.msra.mxu0 %v32
    %64 = vmatpush.msra.mxu0 %v31
    %65 = vmatmul.f32.gmra.mxu0 %v30
    %v66 = vpop.f32.mrf.mxu0
    %v67 = vadd.f32 %v48, %v66
    %68 = vdwg.mxu0
    %s69 = scalar_lea.vmem [#allocation2], 128
    %v70 = vld [vmem:[%s69] sm:$0xff]
    %v71 = vld [vmem:[%s69 + $0x8] sm:$0xff]
    %v72 = vld [vmem:[%s69 + $0x10] sm:$0xff]
    %v73 = vld [vmem:[%s69 + $0x18] sm:$0xff]
    %v74 = vld [vmem:[%s69 + $0x20] sm:$0xff]
    %v75 = vld [vmem:[%s69 + $0x28] sm:$0xff]
    %v76 = vld [vmem:[%s69 + $0x30] sm:$0xff]
    %v77 = vld [vmem:[%s69 + $0x38] sm:$0xff]
    %v78 = vld [vmem:[%s69 + $0x40] sm:$0xff]
    %v79 = vld [vmem:[%s69 + $0x48] sm:$0xff]
    %v80 = vld [vmem:[%s69 + $0x50] sm:$0xff]
    %v81 = vld [vmem:[%s69 + $0x58] sm:$0xff]
    %v82 = vld [vmem:[%s69 + $0x60] sm:$0xff]
    %v83 = vld [vmem:[%s69 + $0x68] sm:$0xff]
    %v84 = vld [vmem:[%s69 + $0x70] sm:$0xff]
    %v85 = vld [vmem:[%s69 + $0x78] sm:$0xff]
    %v86 = vld [vmem:[%s2 + $0x1] sm:$0x1]
    %v87 = vperm.slane %v86, 0
    %88 = vmatpush.msra.mxu0 %v85
    %89 = vmatpush.msra.mxu0 %v84
    %90 = vmatpush.msra.mxu0 %v83
    %91 = vmatpush.msra.mxu0 %v82
    %92 = vmatpush.msra.mxu0 %v81
    %93 = vmatpush.msra.mxu0 %v80
    %94 = vmatpush.msra.mxu0 %v79
    %95 = vmatpush.msra.mxu0 %v78
    %96 = vmatpush.msra.mxu0 %v77
    %97 = vmatpush.msra.mxu0 %v76
    %98 = vmatpush.msra.mxu0 %v75
    %99 = vmatpush.msra.mxu0 %v74
    %100 = vmatpush.msra.mxu0 %v73
    %101 = vmatpush.msra.mxu0 %v72
    %102 = vmatpush.msra.mxu0 %v71
    %103 = vmatpush.msra.mxu0 %v70
    %104 = vmatmul.f32.gmra.mxu0 %v67
    %v105 = vpop.f32.mrf.mxu0
    %v106 = vadd.f32 %v87, %v105
    %107 = vdwg.mxu0
    %v108 = vmax.f32 %v106, 0.0
    %s109 = scalar_lea.vmem [#allocation2], 256
    %v110 = vld [vmem:[%s109] sm:$0xff]
    %v111 = vld [vmem:[%s109 + $0x8] sm:$0xff]
    %v112 = vld [vmem:[%s109 + $0x10] sm:$0xff]
    %v113 = vld [vmem:[%s109 + $0x18] sm:$0xff]
    %v114 = vld [vmem:[%s109 + $0x20] sm:$0xff]
    %v115 = vld [vmem:[%s109 + $0x28] sm:$0xff]
    %v116 = vld [vmem:[%s109 + $0x30] sm:$0xff]
    %v117 = vld [vmem:[%s109 + $0x38] sm:$0xff]
    %v118 = vld [vmem:[%s109 + $0x40] sm:$0xff]
    %v119 = vld [vmem:[%s109 + $0x48] sm:$0xff]
    %v120 = vld [vmem:[%s109 + $0x50] sm:$0xff]
    %v121 = vld [vmem:[%s109 + $0x58] sm:$0xff]
    %v122 = vld [vmem:[%s109 + $0x60] sm:$0xff]
    %v123 = vld [vmem:[%s109 + $0x68] sm:$0xff]
    %v124 = vld [vmem:[%s109 + $0x70] sm:$0xff]
    %v125 = vld [vmem:[%s109 + $0x78] sm:$0xff]
    %v126 = vld [vmem:[%s2 + $0x2] sm:$0x1]
    %v127 = vperm.slane %v126, 0
    %128 = vmatpush.msra.mxu0 %v125
    %129 = vmatpush.msra.mxu0 %v124
    %130 = vmatpush.msra.mxu0 %v123
    %131 = vmatpush.msra.mxu0 %v122
    %132 = vmatpush.msra.mxu0 %v121
    %133 = vmatpush.msra.mxu0 %v120
    %134 = vmatpush.msra.mxu0 %v119
    %135 = vmatpush.msra.mxu0 %v118
    %136 = vmatpush.msra.mxu0 %v117
    %137 = vmatpush.msra.mxu0 %v116
    %138 = vmatpush.msra.mxu0 %v115
    %139 = vmatpush.msra.mxu0 %v114
    %140 = vmatpush.msra.mxu0 %v113
    %141 = vmatpush.msra.mxu0 %v112
    %142 = vmatpush.msra.mxu0 %v111
    %143 = vmatpush.msra.mxu0 %v110
    %144 = vmatmul.f32.gmra.mxu0 %v108
    %v145 = vpop.f32.mrf.mxu0
    %v146 = vadd.f32 %v127, %v145
    %147 = vdwg.mxu0
    %v148 = vmax.f32 %v146, 0.0
    %v149 = vadd.f32 %v67, %v148
    %s150 = scalar_lea.vmem [#allocation2], 384
    %v151 = vld [vmem:[%s150] sm:$0xff]
    %v152 = vld [vmem:[%s150 + $0x8] sm:$0xff]
    %v153 = vld [vmem:[%s150 + $0x10] sm:$0xff]
    %v154 = vld [vmem:[%s150 + $0x18] sm:$0xff]
    %v155 = vld [vmem:[%s150 + $0x20] sm:$0xff]
    %v156 = vld [vmem:[%s150 + $0x28] sm:$0xff]
    %v157 = vld [vmem:[%s150 + $0x30] sm:$0xff]
    %v158 = vld [vmem:[%s150 + $0x38] sm:$0xff]
    %v159 = vld [vmem:[%s150 + $0x40] sm:$0xff]
    %v160 = vld [vmem:[%s150 + $0x48] sm:$0xff]
    %v161 = vld [vmem:[%s150 + $0x50] sm:$0xff]
    %v162 = vld [vmem:[%s150 + $0x58] sm:$0xff]
    %v163 = vld [vmem:[%s150 + $0x60] sm:$0xff]
    %v164 = vld [vmem:[%s150 + $0x68] sm:$0xff]
    %v165 = vld [vmem:[%s150 + $0x70] sm:$0xff]
    %v166 = vld [vmem:[%s150 + $0x78] sm:$0xff]
    %v167 = vld [vmem:[%s2 + $0x3] sm:$0x1]
    %v168 = vperm.slane %v167, 0
    %169 = vmatpush.msra.mxu0 %v166
    %170 = vmatpush.msra.mxu0 %v165
    %171 = vmatpush.msra.mxu0 %v164
    %172 = vmatpush.msra.mxu0 %v163
    %173 = vmatpush.msra.mxu0 %v162
    %174 = vmatpush.msra.mxu0 %v161
    %175 = vmatpush.msra.mxu0 %v160
    %176 = vmatpush.msra.mxu0 %v159
    %177 = vmatpush.msra.mxu0 %v158
    %178 = vmatpush.msra.mxu0 %v157
    %179 = vmatpush.msra.mxu0 %v156
    %180 = vmatpush.msra.mxu0 %v155
    %181 = vmatpush.msra.mxu0 %v154
    %182 = vmatpush.msra.mxu0 %v153
    %183 = vmatpush.msra.mxu0 %v152
    %184 = vmatpush.msra.mxu0 %v151
    %185 = vmatmul.f32.gmra.mxu0 %v149
    %v186 = vpop.f32.mrf.mxu0
    %v187 = vadd.f32 %v168, %v186
    %188 = vdwg.mxu0
    %v189 = vmax.f32 %v187, 0.0
    %s190 = scalar_lea.vmem [#allocation2], 512
    %v191 = vld [vmem:[%s190] sm:$0xff]
    %v192 = vld [vmem:[%s190 + $0x8] sm:$0xff]
    %v193 = vld [vmem:[%s190 + $0x10] sm:$0xff]
    %v194 = vld [vmem:[%s190 + $0x18] sm:$0xff]
    %v195 = vld [vmem:[%s190 + $0x20] sm:$0xff]
    %v196 = vld [vmem:[%s190 + $0x28] sm:$0xff]
    %v197 = vld [vmem:[%s190 + $0x30] sm:$0xff]
    %v198 = vld [vmem:[%s190 + $0x38] sm:$0xff]
    %v199 = vld [vmem:[%s190 + $0x40] sm:$0xff]
    %v200 = vld [vmem:[%s190 + $0x48] sm:$0xff]
    %v201 = vld [vmem:[%s190 + $0x50] sm:$0xff]
    %v202 = vld [vmem:[%s190 + $0x58] sm:$0xff]
    %v203 = vld [vmem:[%s190 + $0x60] sm:$0xff]
    %v204 = vld [vmem:[%s190 + $0x68] sm:$0xff]
    %v205 = vld [vmem:[%s190 + $0x70] sm:$0xff]
    %v206 = vld [vmem:[%s190 + $0x78] sm:$0xff]
    %v207 = vld [vmem:[%s2 + $0x4] sm:$0x1]
    %v208 = vperm.slane %v207, 0
    %209 = vmatpush.msra.mxu0 %v206
    %210 = vmatpush.msra.mxu0 %v205
    %211 = vmatpush.msra.mxu0 %v204
    %212 = vmatpush.msra.mxu0 %v203
    %213 = vmatpush.msra.mxu0 %v202
    %214 = vmatpush.msra.mxu0 %v201
    %215 = vmatpush.msra.mxu0 %v200
    %216 = vmatpush.msra.mxu0 %v199
    %217 = vmatpush.msra.mxu0 %v198
    %218 = vmatpush.msra.mxu0 %v197
    %219 = vmatpush.msra.mxu0 %v196
    %220 = vmatpush.msra.mxu0 %v195
    %221 = vmatpush.msra.mxu0 %v194
    %222 = vmatpush.msra.mxu0 %v193
    %223 = vmatpush.msra.mxu0 %v192
    %224 = vmatpush.msra.mxu0 %v191
    %225 = vmatmul.f32.gmra.mxu0 %v189
    %v226 = vpop.f32.mrf.mxu0
    %v227 = vadd.f32 %v208, %v226
    %228 = vdwg.mxu0
    %v229 = vmax.f32 %v227, 0.0
    %v230 = vadd.f32 %v149, %v229
    %s231 = scalar_lea.vmem [#allocation2], 640
    %v232 = vld [vmem:[%s231] sm:$0xff]
    %v233 = vld [vmem:[%s231 + $0x8] sm:$0xff]
    %v234 = vld [vmem:[%s231 + $0x10] sm:$0xff]
    %v235 = vld [vmem:[%s231 + $0x18] sm:$0xff]
    %v236 = vld [vmem:[%s231 + $0x20] sm:$0xff]
    %v237 = vld [vmem:[%s231 + $0x28] sm:$0xff]
    %v238 = vld [vmem:[%s231 + $0x30] sm:$0xff]
    %v239 = vld [vmem:[%s231 + $0x38] sm:$0xff]
    %v240 = vld [vmem:[%s231 + $0x40] sm:$0xff]
    %v241 = vld [vmem:[%s231 + $0x48] sm:$0xff]
    %v242 = vld [vmem:[%s231 + $0x50] sm:$0xff]
    %v243 = vld [vmem:[%s231 + $0x58] sm:$0xff]
    %v244 = vld [vmem:[%s231 + $0x60] sm:$0xff]
    %v245 = vld [vmem:[%s231 + $0x68] sm:$0xff]
    %v246 = vld [vmem:[%s231 + $0x70] sm:$0xff]
    %v247 = vld [vmem:[%s231 + $0x78] sm:$0xff]
    %v248 = vld [vmem:[%s2 + $0x5] sm:$0x1]
    %v249 = vperm.slane %v248, 0
    %250 = vmatpush.msra.mxu0 %v247
    %251 = vmatpush.msra.mxu0 %v246
    %252 = vmatpush.msra.mxu0 %v245
    %253 = vmatpush.msra.mxu0 %v244
    %254 = vmatpush.msra.mxu0 %v243
    %255 = vmatpush.msra.mxu0 %v242
    %256 = vmatpush.msra.mxu0 %v241
    %257 = vmatpush.msra.mxu0 %v240
    %258 = vmatpush.msra.mxu0 %v239
    %259 = vmatpush.msra.mxu0 %v238
    %260 = vmatpush.msra.mxu0 %v237
    %261 = vmatpush.msra.mxu0 %v236
    %262 = vmatpush.msra.mxu0 %v235
    %263 = vmatpush.msra.mxu0 %v234
    %264 = vmatpush.msra.mxu0 %v233
    %265 = vmatpush.msra.mxu0 %v232
    %266 = vmatmul.f32.gmra.mxu0 %v230
    %v267 = vpop.f32.mrf.mxu0
    %v268 = vadd.f32 %v249, %v267
    %269 = vdwg.mxu0
    %s270 = scalar_lea.vmem [#allocation2], 768
    %v271 = vld [vmem:[%s270] sm:$0xff]
    %v272 = vld [vmem:[%s270 + $0x8] sm:$0xff]
    %v273 = vld [vmem:[%s270 + $0x10] sm:$0xff]
    %v274 = vld [vmem:[%s270 + $0x18] sm:$0xff]
    %v275 = vld [vmem:[%s270 + $0x20] sm:$0xff]
    %v276 = vld [vmem:[%s270 + $0x28] sm:$0xff]
    %v277 = vld [vmem:[%s270 + $0x30] sm:$0xff]
    %v278 = vld [vmem:[%s270 + $0x38] sm:$0xff]
    %v279 = vld [vmem:[%s270 + $0x40] sm:$0xff]
    %v280 = vld [vmem:[%s270 + $0x48] sm:$0xff]
    %v281 = vld [vmem:[%s270 + $0x50] sm:$0xff]
    %v282 = vld [vmem:[%s270 + $0x58] sm:$0xff]
    %v283 = vld [vmem:[%s270 + $0x60] sm:$0xff]
    %v284 = vld [vmem:[%s270 + $0x68] sm:$0xff]
    %v285 = vld [vmem:[%s270 + $0x70] sm:$0xff]
    %v286 = vld [vmem:[%s270 + $0x78] sm:$0xff]
    %v287 = vld [vmem:[%s2 + $0x6] sm:$0x1]
    %v288 = vperm.slane %v287, 0
    %289 = vmatpush.msra.mxu0 %v286
    %290 = vmatpush.msra.mxu0 %v285
    %291 = vmatpush.msra.mxu0 %v284
    %292 = vmatpush.msra.mxu0 %v283
    %293 = vmatpush.msra.mxu0 %v282
    %294 = vmatpush.msra.mxu0 %v281
    %295 = vmatpush.msra.mxu0 %v280
    %296 = vmatpush.msra.mxu0 %v279
    %297 = vmatpush.msra.mxu0 %v278
    %298 = vmatpush.msra.mxu0 %v277
    %299 = vmatpush.msra.mxu0 %v276
    %300 = vmatpush.msra.mxu0 %v275
    %301 = vmatpush.msra.mxu0 %v274
    %302 = vmatpush.msra.mxu0 %v273
    %303 = vmatpush.msra.mxu0 %v272
    %304 = vmatpush.msra.mxu0 %v271
    %305 = vmatmul.f32.gmra.mxu0 %v268
    %v306 = vpop.f32.mrf.mxu0
    %v307 = vadd.f32 %v288, %v306
    %308 = vdwg.mxu0
    %309 = vst [vmem:[%s3] sm:$0xff] %v268
    %310 = vst [vmem:[%s3 + $0x8] sm:$0xff] %v307
    // Predicated region
    $region18: #{lift_model2_forward.1} parent=1 // pred_check
      _
    $region19: #{lift_model2_forward.1} parent=1 // pred_check_branch
      %312 = sbr.rel (0) target = $region21
    $region20: #{lift_model2_forward.1} parent=1 // pred_region
      _
    $region21: #{lift_model2_forward.1} parent=1 // pred_fallthru
      _
    // Predicated region
    $region22: #{lift_model2_forward.1} parent=1 // pred_check
      _
    $region23: #{lift_model2_forward.1} parent=1 // pred_check_branch
      %314 = sbr.rel (0) target = $region25
    $region24: #{lift_model2_forward.1} parent=1 // pred_region
      _
    $region25: #{lift_model2_forward.1} parent=1 // pred_fallthru
      _
    %315 = vsyncpa [#allocation3], 1

</llo_original>
